<compile_context>
chip_gen: v5e
topology: v5e:2x2
jax: 0.10.0
libtpu: 0.0.40
codegen_flags: <defaults>
</compile_context>

<pallas_src>
import jax
import jax.numpy as jnp
from jax.experimental import pallas as pl
from jax.experimental.pallas import tpu as pltpu

DIM_IN = 256      # WORD_EMBEDDING_DIM
DIM_OUT = 256     # AUTOENCODING_DIM


def emb2ae_kernel(x_ref, w1_ref, b1_ref, w2_ref, b2_ref, o_ref):
    # x_ref: (tm, DIM_IN)      w1_ref: (DIM_IN, DIM_OUT)   b1_ref: (1, DIM_OUT) f32
    # w2_ref: (DIM_OUT, DIM_OUT)  b2_ref: (1, DIM_OUT) f32  o_ref: (tm, DIM_OUT)

    # Linear 1: native-dtype MXU matmul, f32 accumulation, f32 bias + ReLU.
    h = jnp.dot(x_ref[...], w1_ref[...], preferred_element_type=jnp.float32)
    h = jnp.maximum(h + b1_ref[...], 0.0)

    # Linear 2: cast the f32 activation down to the weight dtype for the MXU
    # (no-op for f32 weights), accumulate in f32, add bias in f32.
    y = jnp.dot(h.astype(w2_ref.dtype), w2_ref[...],
                preferred_element_type=jnp.float32)
    y = y + b2_ref[...]

    o_ref[...] = y.astype(o_ref.dtype)


def emb2autoencoding(x, w1, b1, w2, b2, *, tm=512):
    """Emb2AutoEncoding forward: x [..., 256] -> [..., 256].

    w1/w2 are [D_in, D_out] (transposed vs. PyTorch), b1/b2 are [D_out].
    Handles arbitrary leading dims / batch size via flatten + pad + slice.
    """
    orig_shape = x.shape
    assert orig_shape[-1] == DIM_IN, f"last dim must be {DIM_IN}"
    x2 = x.reshape(-1, DIM_IN)
    B = x2.shape[0]

    # Sublane alignment of the batch tile depends on the activation dtype.
    sublane = 16 if x2.dtype == jnp.bfloat16 else 8

    # Clamp tile to the aligned batch (avoid over-padding tiny batches), then
    # round the tile itself up to a legal sublane multiple.
    tm = max(sublane, min(int(tm), pl.cdiv(B, sublane) * sublane))
    tm = pl.cdiv(tm, sublane) * sublane

    grid_m = pl.cdiv(B, tm)
    b_pad = grid_m * tm
    if b_pad != B:
        x2 = jnp.pad(x2, ((0, b_pad - B), (0, 0)))

    # Keep the bias-add / ReLU epilogue in f32 regardless of model dtype.
    b1_2d = b1.reshape(1, DIM_OUT).astype(jnp.float32)
    b2_2d = b2.reshape(1, DIM_OUT).astype(jnp.float32)

    elt = jnp.dtype(x2.dtype).itemsize
    welt = jnp.dtype(w1.dtype).itemsize
    cost = pl.CostEstimate(
        flops=4 * b_pad * DIM_IN * DIM_OUT,            # two GEMMs
        transcendentals=0,
        bytes_accessed=(b_pad * DIM_IN + b_pad * DIM_OUT) * elt
        + (DIM_IN * DIM_OUT + DIM_OUT * DIM_OUT) * welt
        + 2 * DIM_OUT * 4,
    )

    out = pl.pallas_call(
        emb2ae_kernel,
        out_shape=jax.ShapeDtypeStruct((b_pad, DIM_OUT), x2.dtype),
        grid_spec=pltpu.PrefetchScalarGridSpec(
            num_scalar_prefetch=0,
            grid=(grid_m,),
            in_specs=[
                pl.BlockSpec((tm, DIM_IN), lambda i: (i, 0)),        # x tile
                pl.BlockSpec((DIM_IN, DIM_OUT), lambda i: (0, 0)),   # W1 (resident)
                pl.BlockSpec((1, DIM_OUT), lambda i: (0, 0)),        # b1 (f32)
                pl.BlockSpec((DIM_OUT, DIM_OUT), lambda i: (0, 0)),  # W2 (resident)
                pl.BlockSpec((1, DIM_OUT), lambda i: (0, 0)),        # b2 (f32)
            ],
            out_specs=pl.BlockSpec((tm, DIM_OUT), lambda i: (i, 0)),
        ),
        compiler_params=pltpu.CompilerParams(
            dimension_semantics=("parallel",)),
        cost_estimate=cost,
    )(x2, w1, b1_2d, w2, b2_2d)

    return out[:B].reshape(orig_shape[:-1] + (DIM_OUT,))


def reference(x, w1, b1, w2, b2):
    """Pure-JAX f32 reference (uses whatever dtype the args carry)."""
    xf = x.astype(jnp.float32)
    h = jnp.maximum(xf @ w1.astype(jnp.float32) + b1.astype(jnp.float32), 0.0)
    return h @ w2.astype(jnp.float32) + b2.astype(jnp.float32)


def init_linear(key, d_in, d_out):
    """Deterministic PyTorch-style init: U(-1/sqrt(d_in), 1/sqrt(d_in))."""
    kw, kb = jax.random.split(key)
    bound = 1.0 / jnp.sqrt(d_in)
    w = jax.random.uniform(kw, (d_in, d_out), jnp.float32, -bound, bound)
    b = jax.random.uniform(kb, (d_out,), jnp.float32, -bound, bound)
    return w, b


if __name__ == "__main__":
    key = jax.random.PRNGKey(0)
    kx, k1, k2 = jax.random.split(key, 3)

    # Small, non-tile-multiple batch to exercise the padding path.
    B = 10
    x = jax.random.normal(kx, (B, DIM_IN), jnp.float32)
    w1, b1 = init_linear(k1, DIM_IN, DIM_OUT)
    w2, b2 = init_linear(k2, DIM_OUT, DIM_OUT)

    # f32 path
    out = jax.block_until_ready(emb2autoencoding(x, w1, b1, w2, b2))
    ref = reference(x, w1, b1, w2, b2)
    assert out.shape == (B, DIM_OUT)
    assert jnp.allclose(out, ref, atol=1e-4, rtol=1e-4), "f32 mismatch vs reference"

    # bf16 I/O path (halves HBM traffic; fast MXU path). Compare against a
    # bf16-weight reference with looser tolerance.
    x_bf = x.astype(jnp.bfloat16)
    w1_bf, w2_bf = w1.astype(jnp.bfloat16), w2.astype(jnp.bfloat16)
    out_bf = jax.block_until_ready(emb2autoencoding(x_bf, w1_bf, b1, w2_bf, b2))
    ref_bf = reference(x_bf, w1_bf, b1, w2_bf, b2)
    assert out_bf.shape == (B, DIM_OUT)
    assert jnp.allclose(out_bf.astype(jnp.float32), ref_bf, atol=5e-2, rtol=5e-2), \
        "bf16 mismatch vs reference"

    print("KERNEL_OK")
</pallas_src>

<mosaic_0001>
module attributes {stable_mosaic.version = 11 : i64} {
  func.func @emb2ae_kernel(%arg0: i32, %arg1: memref<16x256xf32, #tpu.memory_space<vmem>>, %arg2: memref<256x256xf32, #tpu.memory_space<vmem>>, %arg3: memref<1x256xf32, #tpu.memory_space<vmem>>, %arg4: memref<256x256xf32, #tpu.memory_space<vmem>>, %arg5: memref<1x256xf32, #tpu.memory_space<vmem>>, %arg6: memref<16x256xf32, #tpu.memory_space<vmem>>) attributes {dimension_semantics = [#tpu.dimension_semantics<parallel>], iteration_bounds = array<i64: 1>, scalar_prefetch = 0 : i64, scratch_operands = 0 : i64, tpu.core_type = #tpu.core_type<tc>, window_params = [{transform_indices = @transform_0, window_bounds = array<i64: 16, 256>}, {pipeline_mode = #tpu.pipeline_mode<synchronous>, transform_indices = @transform_1, window_bounds = array<i64: 256, 256>}, {pipeline_mode = #tpu.pipeline_mode<synchronous>, transform_indices = @transform_2, window_bounds = array<i64: 1, 256>}, {pipeline_mode = #tpu.pipeline_mode<synchronous>, transform_indices = @transform_3, window_bounds = array<i64: 256, 256>}, {pipeline_mode = #tpu.pipeline_mode<synchronous>, transform_indices = @transform_4, window_bounds = array<i64: 1, 256>}, {transform_indices = @transform_5, window_bounds = array<i64: 16, 256>}]} {
    %c0 = arith.constant 0 : index
    %c0_0 = arith.constant 0 : index
    %0 = vector.load %arg1[%c0, %c0_0] : memref<16x256xf32, #tpu.memory_space<vmem>>, vector<16x256xf32>
    %c0_1 = arith.constant 0 : index
    %c0_2 = arith.constant 0 : index
    %1 = vector.load %arg2[%c0_1, %c0_2] : memref<256x256xf32, #tpu.memory_space<vmem>>, vector<256x256xf32>
    %cst = arith.constant dense<0.000000e+00> : vector<16x256xf32>
    %2 = tpu.matmul %0, %1, %cst {dimension_numbers = #tpu.dot_dimension_numbers<[1], [0], [0], [1], [0, 0, 1, 1], [], []>} : vector<16x256xf32>, vector<256x256xf32>, vector<16x256xf32> -> vector<16x256xf32>
    %c0_3 = arith.constant 0 : index
    %c0_4 = arith.constant 0 : index
    %3 = vector.load %arg3[%c0_3, %c0_4] : memref<1x256xf32, #tpu.memory_space<vmem>>, vector<1x256xf32>
    %4 = vector.broadcast %3 : vector<1x256xf32> to vector<16x256xf32>
    %5 = arith.addf %2, %4 : vector<16x256xf32>
    %cst_5 = arith.constant 0.000000e+00 : f32
    %6 = vector.broadcast %cst_5 : f32 to vector<16x256xf32>
    %7 = arith.maximumf %5, %6 : vector<16x256xf32>
    %c0_6 = arith.constant 0 : index
    %c0_7 = arith.constant 0 : index
    %8 = vector.load %arg4[%c0_6, %c0_7] : memref<256x256xf32, #tpu.memory_space<vmem>>, vector<256x256xf32>
    %cst_8 = arith.constant dense<0.000000e+00> : vector<16x256xf32>
    %9 = tpu.matmul %7, %8, %cst_8 {dimension_numbers = #tpu.dot_dimension_numbers<[1], [0], [0], [1], [0, 0, 1, 1], [], []>} : vector<16x256xf32>, vector<256x256xf32>, vector<16x256xf32> -> vector<16x256xf32>
    %c0_9 = arith.constant 0 : index
    %c0_10 = arith.constant 0 : index
    %10 = vector.load %arg5[%c0_9, %c0_10] : memref<1x256xf32, #tpu.memory_space<vmem>>, vector<1x256xf32>
    %11 = vector.broadcast %10 : vector<1x256xf32> to vector<16x256xf32>
    %12 = arith.addf %9, %11 : vector<16x256xf32>
    %c0_11 = arith.constant 0 : index
    %c0_12 = arith.constant 0 : index
    %13 = vector.load %arg6[%c0_11, %c0_12] : memref<16x256xf32, #tpu.memory_space<vmem>>, vector<16x256xf32>
    tpu.vector_store %arg6[%c0_11, %c0_12], %12 {strides = array<i32>} : memref<16x256xf32, #tpu.memory_space<vmem>>, vector<16x256xf32>,
    return
  }
  func.func @transform_0(%arg0: i32) -> (i32, i32) {
    %c0_i32 = arith.constant 0 : i32
    %c0_i32_0 = arith.constant 0 : i32
    return %arg0, %c0_i32 : i32, i32
  }
  func.func @transform_1(%arg0: i32) -> (i32, i32) {
    %c0_i32 = arith.constant 0 : i32
    %c0_i32_0 = arith.constant 0 : i32
    %c0_i32_1 = arith.constant 0 : i32
    return %c0_i32, %c0_i32_0 : i32, i32
  }
  func.func @transform_2(%arg0: i32) -> (i32, i32) {
    %c0_i32 = arith.constant 0 : i32
    %c0_i32_0 = arith.constant 0 : i32
    %c0_i32_1 = arith.constant 0 : i32
    return %c0_i32, %c0_i32_0 : i32, i32
  }
  func.func @transform_3(%arg0: i32) -> (i32, i32) {
    %c0_i32 = arith.constant 0 : i32
    %c0_i32_0 = arith.constant 0 : i32
    %c0_i32_1 = arith.constant 0 : i32
    return %c0_i32, %c0_i32_0 : i32, i32
  }
  func.func @transform_4(%arg0: i32) -> (i32, i32) {
    %c0_i32 = arith.constant 0 : i32
    %c0_i32_0 = arith.constant 0 : i32
    %c0_i32_1 = arith.constant 0 : i32
    return %c0_i32, %c0_i32_0 : i32, i32
  }
  func.func @transform_5(%arg0: i32) -> (i32, i32) {
    %c0_i32 = arith.constant 0 : i32
    %c0_i32_0 = arith.constant 0 : i32
    return %arg0, %c0_i32 : i32, i32
  }
}

</mosaic_0001>

<llo_original>
// kernel: tpu_custom_call.1
$region0: #{tpu_custom_call.1}
  #allocation0 [shape = 'u32[]', space=smem, size = 0x4, offset = 0x4, fixed_abs, tag = 'smem constant byte address 0x4 - core index']
  #allocation1 [shape = 'u32[72,128]{1,0:T(1,128)}', space=vmem, size = 0x9000, scoped, tag = 'internal scratch']
  %s0 = inlined_call_operand.hbm [shape: f32[16,256], index: 0, kind: input, shape index: {}]
  %s1 = inlined_call_operand.hbm [shape: f32[256,256], index: 1, kind: input, shape index: {}]
  %s2 = inlined_call_operand.hbm [shape: f32[1,256], index: 2, kind: input, shape index: {}]
  %s3 = inlined_call_operand.hbm [shape: f32[256,256], index: 3, kind: input, shape index: {}]
  %s4 = inlined_call_operand.vmem [shape: f32[1,256], index: 4, kind: input, shape index: {}]
  %s5 = inlined_call_operand.hbm [shape: f32[16,256], index: 5, kind: output, shape index: {}]
  %s6 = sld [smem:[#allocation0]]
  $region46: #{tpu_custom_call.1} parent=0
    _
  %s8 = ssub.s32 1, %s6
  %s9 = scalar_select 0, %s8, %s6
  $region1: #{tpu_custom_call.1} parent=0
    #allocation2 [shape = 'u8[16384]{0}', space=vmem, size = 0x4000, scoped, tag = 'input window, operand 0, single buffered']
    #allocation3 [shape = 's32[1]{0}', space=sflag, size = 0x4, scoped, tag = 'scoped memory for tpu_custom_call.1']
    #allocation4 [shape = 's32[1]{0}', space=sflag, size = 0x4, scoped, tag = 'scoped memory for tpu_custom_call.1']
    #allocation5 [shape = 'u8[262144]{0}', space=vmem, size = 0x40000, scoped, tag = 'input window, operand 1, single buffered']
    #allocation6 [shape = 's32[1]{0}', space=sflag, size = 0x4, scoped, tag = 'scoped memory for tpu_custom_call.1']
    #allocation7 [shape = 'u8[1024]{0}', space=vmem, size = 0x400, scoped, tag = 'input window, operand 2, single buffered']
    #allocation8 [shape = 'u8[262144]{0}', space=vmem, size = 0x40000, scoped, tag = 'input window, operand 3, single buffered']
    #allocation9 [shape = 's32[1]{0}', space=sflag, size = 0x4, scoped, tag = 'scoped memory for tpu_custom_call.1']
    #allocation10 [shape = 'u8[16384]{0}', space=vmem, size = 0x4000, scoped, tag = 'output window, operand 0, single buffered']
    %10 = vsyncpa [#allocation3], 0
    %11 = vsyncpa [#allocation6], 0
    %12 = vsyncpa [#allocation9], 0
    %13 = vsyncpa [#allocation4], 0
    // Predicated region
    $region2: #{tpu_custom_call.1} parent=1 // pred_check
      _
    $region3: #{tpu_custom_call.1} parent=1 // pred_check_branch
      %15 = sbr.rel (0) target = $region5
    $region4: #{tpu_custom_call.1} parent=1 // pred_region
      %17 = vsyncadd [#allocation3], 0
      %s18 = sshll.u32 %s0, 4
      %s19 = int_to_ptr.hbm [resolvable:$true] %s18
      %s20 = sshll.u32 [#allocation2], 4
      %s21 = int_to_ptr.vmem [resolvable:$true] %s20
      %26 = dma.hbm_to_vmem [thread:$0]  %s19, 512, %s21, [#allocation3], 256, 256, 16
    $region5: #{tpu_custom_call.1} parent=1 // pred_fallthru
      _
    // Predicated region
    $region6: #{tpu_custom_call.1} parent=1 // pred_check
      _
    $region7: #{tpu_custom_call.1} parent=1 // pred_check_branch
      %28 = sbr.rel (0) target = $region9
    $region8: #{tpu_custom_call.1} parent=1 // pred_region
      %30 = vsyncadd [#allocation6], 0
      %s31 = sshll.u32 %s1, 4
      %s32 = int_to_ptr.hbm [resolvable:$true] %s31
      %s33 = sshll.u32 [#allocation5], 4
      %s34 = int_to_ptr.vmem [resolvable:$true] %s33
      %39 = dma.hbm_to_vmem [thread:$0]  %s32, 8192, %s34, [#allocation6], 256, 256, 16
    $region9: #{tpu_custom_call.1} parent=1 // pred_fallthru
      _
    // Predicated region
    $region10: #{tpu_custom_call.1} parent=1 // pred_check
      _
    $region11: #{tpu_custom_call.1} parent=1 // pred_check_branch
      %41 = sbr.rel (0) target = $region13
    $region12: #{tpu_custom_call.1} parent=1 // pred_region
      %43 = vsyncadd [#allocation6], 0
      %s45 = sshll.u32 %s2, 4
      %s46 = int_to_ptr.hbm [resolvable:$true] %s45
      %s47 = sshll.u32 [#allocation7], 4
      %s48 = int_to_ptr.vmem [resolvable:$true] %s47
      %50 = dma.hbm_to_vmem [thread:$0]  %s46, 32, %s48, [#allocation6]
    $region13: #{tpu_custom_call.1} parent=1 // pred_fallthru
      _
    // Predicated region
    $region14: #{tpu_custom_call.1} parent=1 // pred_check
      _
    $region15: #{tpu_custom_call.1} parent=1 // pred_check_branch
      %52 = sbr.rel (0) target = $region17
    $region16: #{tpu_custom_call.1} parent=1 // pred_region
      %54 = vsyncadd [#allocation9], 0
      %s55 = sshll.u32 %s3, 4
      %s56 = int_to_ptr.hbm [resolvable:$true] %s55
      %s57 = sshll.u32 [#allocation8], 4
      %s58 = int_to_ptr.vmem [resolvable:$true] %s57
      %63 = dma.hbm_to_vmem [thread:$0]  %s56, 8192, %s58, [#allocation9], 256, 256, 16
    $region17: #{tpu_custom_call.1} parent=1 // pred_fallthru
      _
    // Predicated region
    $region18: #{tpu_custom_call.1} parent=1 // pred_check
      _
    $region19: #{tpu_custom_call.1} parent=1 // pred_check_branch
      %65 = sbr.rel (0) target = $region21
    $region20: #{tpu_custom_call.1} parent=1 // pred_region
      _
    $region21: #{tpu_custom_call.1} parent=1 // pred_fallthru
      _
    // Predicated region
    $region22: #{tpu_custom_call.1} parent=1 // pred_check
      _
    $region23: #{tpu_custom_call.1} parent=1 // pred_check_branch
      %67 = sbr.rel (0) target = $region25
    $region24: #{tpu_custom_call.1} parent=1 // pred_region
      %69 = dma.done [#allocation3], 512
    $region25: #{tpu_custom_call.1} parent=1 // pred_fallthru
      _
    // Predicated region
    $region26: #{tpu_custom_call.1} parent=1 // pred_check
      _
    $region27: #{tpu_custom_call.1} parent=1 // pred_check_branch
      %71 = sbr.rel (0) target = $region29
    $region28: #{tpu_custom_call.1} parent=1 // pred_region
      %73 = dma.done [#allocation6], 8192
    $region29: #{tpu_custom_call.1} parent=1 // pred_fallthru
      _
    // Predicated region
    $region30: #{tpu_custom_call.1} parent=1 // pred_check
      _
    $region31: #{tpu_custom_call.1} parent=1 // pred_check_branch
      %75 = sbr.rel (0) target = $region33
    $region32: #{tpu_custom_call.1} parent=1 // pred_region
      %77 = dma.done [#allocation6], 32
    $region33: #{tpu_custom_call.1} parent=1 // pred_fallthru
      _
    // Predicated region
    $region34: #{tpu_custom_call.1} parent=1 // pred_check
      _
    $region35: #{tpu_custom_call.1} parent=1 // pred_check_branch
      %79 = sbr.rel (0) target = $region37
    $region36: #{tpu_custom_call.1} parent=1 // pred_region
      %81 = dma.done [#allocation9], 8192
    $region37: #{tpu_custom_call.1} parent=1 // pred_fallthru
      _
    %v82 = vld [vmem:[#allocation2] sm:$0xff]
    %v83 = vld [vmem:[#allocation2 + $0x8] sm:$0xff]
    %v84 = vld [vmem:[#allocation2 + $0x10] sm:$0xff]
    %v85 = vld [vmem:[#allocation2 + $0x18] sm:$0xff]
    %v86 = vld [vmem:[#allocation5] sm:$0xff]
    %v87 = vld [vmem:[#allocation5 + $0x8] sm:$0xff]
    %v88 = vld [vmem:[#allocation5 + $0x10] sm:$0xff]
    %v89 = vld [vmem:[#allocation5 + $0x18] sm:$0xff]
    %v90 = vld [vmem:[#allocation5 + $0x20] sm:$0xff]
    %v91 = vld [vmem:[#allocation5 + $0x28] sm:$0xff]
    %v92 = vld [vmem:[#allocation5 + $0x30] sm:$0xff]
    %v93 = vld [vmem:[#allocation5 + $0x38] sm:$0xff]
    %v94 = vld [vmem:[#allocation5 + $0x40] sm:$0xff]
    %v95 = vld [vmem:[#allocation5 + $0x48] sm:$0xff]
    %v96 = vld [vmem:[#allocation5 + $0x50] sm:$0xff]
    %v97 = vld [vmem:[#allocation5 + $0x58] sm:$0xff]
    %v98 = vld [vmem:[#allocation5 + $0x60] sm:$0xff]
    %v99 = vld [vmem:[#allocation5 + $0x68] sm:$0xff]
    %v100 = vld [vmem:[#allocation5 + $0x70] sm:$0xff]
    %v101 = vld [vmem:[#allocation5 + $0x78] sm:$0xff]
    %v102 = vld [vmem:[#allocation5 + $0x80] sm:$0xff]
    %v103 = vld [vmem:[#allocation5 + $0x88] sm:$0xff]
    %v104 = vld [vmem:[#allocation5 + $0x90] sm:$0xff]
    %v105 = vld [vmem:[#allocation5 + $0x98] sm:$0xff]
    %v106 = vld [vmem:[#allocation5 + $0xa0] sm:$0xff]
    %v107 = vld [vmem:[#allocation5 + $0xa8] sm:$0xff]
    %v108 = vld [vmem:[#allocation5 + $0xb0] sm:$0xff]
    %v109 = vld [vmem:[#allocation5 + $0xb8] sm:$0xff]
    %v110 = vld [vmem:[#allocation5 + $0xc0] sm:$0xff]
    %v111 = vld [vmem:[#allocation5 + $0xc8] sm:$0xff]
    %v112 = vld [vmem:[#allocation5 + $0xd0] sm:$0xff]
    %v113 = vld [vmem:[#allocation5 + $0xd8] sm:$0xff]
    %v114 = vld [vmem:[#allocation5 + $0xe0] sm:$0xff]
    %v115 = vld [vmem:[#allocation5 + $0xe8] sm:$0xff]
    %v116 = vld [vmem:[#allocation5 + $0xf0] sm:$0xff]
    %v117 = vld [vmem:[#allocation5 + $0xf8] sm:$0xff]
    %v118 = vld [vmem:[#allocation5 + $0x100] sm:$0xff]
    %v119 = vld [vmem:[#allocation5 + $0x108] sm:$0xff]
    %v120 = vld [vmem:[#allocation5 + $0x110] sm:$0xff]
    %v121 = vld [vmem:[#allocation5 + $0x118] sm:$0xff]
    %v122 = vld [vmem:[#allocation5 + $0x120] sm:$0xff]
    %v123 = vld [vmem:[#allocation5 + $0x128] sm:$0xff]
    %v124 = vld [vmem:[#allocation5 + $0x130] sm:$0xff]
    %v125 = vld [vmem:[#allocation5 + $0x138] sm:$0xff]
    %v126 = vld [vmem:[#allocation5 + $0x140] sm:$0xff]
    %v127 = vld [vmem:[#allocation5 + $0x148] sm:$0xff]
    %v128 = vld [vmem:[#allocation5 + $0x150] sm:$0xff]
    %v129 = vld [vmem:[#allocation5 + $0x158] sm:$0xff]
    %v130 = vld [vmem:[#allocation5 + $0x160] sm:$0xff]
    %v131 = vld [vmem:[#allocation5 + $0x168] sm:$0xff]
    %v132 = vld [vmem:[#allocation5 + $0x170] sm:$0xff]
    %v133 = vld [vmem:[#allocation5 + $0x178] sm:$0xff]
    %v134 = vld [vmem:[#allocation5 + $0x180] sm:$0xff]
    %v135 = vld [vmem:[#allocation5 + $0x188] sm:$0xff]
    %v136 = vld [vmem:[#allocation5 + $0x190] sm:$0xff]
    %v137 = vld [vmem:[#allocation5 + $0x198] sm:$0xff]
    %v138 = vld [vmem:[#allocation5 + $0x1a0] sm:$0xff]
    %v139 = vld [vmem:[#allocation5 + $0x1a8] sm:$0xff]
    %v140 = vld [vmem:[#allocation5 + $0x1b0] sm:$0xff]
    %v141 = vld [vmem:[#allocation5 + $0x1b8] sm:$0xff]
    %v142 = vld [vmem:[#allocation5 + $0x1c0] sm:$0xff]
    %v143 = vld [vmem:[#allocation5 + $0x1c8] sm:$0xff]
    %v144 = vld [vmem:[#allocation5 + $0x1d0] sm:$0xff]
    %v145 = vld [vmem:[#allocation5 + $0x1d8] sm:$0xff]
    %v146 = vld [vmem:[#allocation5 + $0x1e0] sm:$0xff]
    %v147 = vld [vmem:[#allocation5 + $0x1e8] sm:$0xff]
    %v148 = vld [vmem:[#allocation5 + $0x1f0] sm:$0xff]
    %v149 = vld [vmem:[#allocation5 + $0x1f8] sm:$0xff]
    %v150 = vld [vmem:[#allocation7] sm:$0x3]
    %v152 = vperm.slane %v150, 0
    %v153 = vperm.slane %v150, 1
    %156 = vmatpush.msra.mxu0 %v116
    %157 = vmatpush.msra.mxu0 %v114
    %158 = vmatpush.msra.mxu0 %v112
    %159 = vmatpush.msra.mxu0 %v110
    %160 = vmatpush.msra.mxu0 %v108
    %161 = vmatpush.msra.mxu0 %v106
    %162 = vmatpush.msra.mxu0 %v104
    %163 = vmatpush.msra.mxu0 %v102
    %164 = vmatpush.msra.mxu0 %v100
    %165 = vmatpush.msra.mxu0 %v98
    %166 = vmatpush.msra.mxu0 %v96
    %167 = vmatpush.msra.mxu0 %v94
    %168 = vmatpush.msra.mxu0 %v92
    %169 = vmatpush.msra.mxu0 %v90
    %170 = vmatpush.msra.mxu0 %v88
    %171 = vmatpush.msra.mxu0 %v86
    %172 = vmatmul.f32.gmra.mxu0 %v82
    %v173 = vpop.f32.mrf.mxu0
    %v174 = vadd.f32 %v152, %v173
    %175 = vmatmul.f32.gmra.mxu0 %v84
    %v176 = vpop.f32.mrf.mxu0
    %v177 = vadd.f32 %v152, %v176
    %178 = vdwg.mxu0
    %179 = vmatpush.msra.mxu0 %v148
    %180 = vmatpush.msra.mxu0 %v146
    %181 = vmatpush.msra.mxu0 %v144
    %182 = vmatpush.msra.mxu0 %v142
    %183 = vmatpush.msra.mxu0 %v140
    %184 = vmatpush.msra.mxu0 %v138
    %185 = vmatpush.msra.mxu0 %v136
    %186 = vmatpush.msra.mxu0 %v134
    %187 = vmatpush.msra.mxu0 %v132
    %188 = vmatpush.msra.mxu0 %v130
    %189 = vmatpush.msra.mxu0 %v128
    %190 = vmatpush.msra.mxu0 %v126
    %191 = vmatpush.msra.mxu0 %v124
    %192 = vmatpush.msra.mxu0 %v122
    %193 = vmatpush.msra.mxu0 %v120
    %194 = vmatpush.msra.mxu0 %v118
    %195 = vmatmul.f32.gmra.mxu0 %v83
    %v196 = vpop.f32.mrf.mxu0
    %v197 = vadd.f32 %v174, %v196
    %198 = vmatmul.f32.gmra.mxu0 %v85
    %v199 = vpop.f32.mrf.mxu0
    %v200 = vadd.f32 %v177, %v199
    %201 = vdwg.mxu0
    %202 = vmatpush.msra.mxu0 %v117
    %203 = vmatpush.msra.mxu0 %v115
    %204 = vmatpush.msra.mxu0 %v113
    %205 = vmatpush.msra.mxu0 %v111
    %206 = vmatpush.msra.mxu0 %v109
    %207 = vmatpush.msra.mxu0 %v107
    %208 = vmatpush.msra.mxu0 %v105
    %209 = vmatpush.msra.mxu0 %v103
    %210 = vmatpush.msra.mxu0 %v101
    %211 = vmatpush.msra.mxu0 %v99
    %212 = vmatpush.msra.mxu0 %v97
    %213 = vmatpush.msra.mxu0 %v95
    %214 = vmatpush.msra.mxu0 %v93
    %215 = vmatpush.msra.mxu0 %v91
    %216 = vmatpush.msra.mxu0 %v89
    %217 = vmatpush.msra.mxu0 %v87
    %218 = vmatmul.f32.gmra.mxu0 %v82
    %v219 = vpop.f32.mrf.mxu0
    %v220 = vadd.f32 %v153, %v219
    %221 = vmatmul.f32.gmra.mxu0 %v84
    %v222 = vpop.f32.mrf.mxu0
    %v223 = vadd.f32 %v153, %v222
    %224 = vdwg.mxu0
    %225 = vmatpush.msra.mxu0 %v149
    %226 = vmatpush.msra.mxu0 %v147
    %227 = vmatpush.msra.mxu0 %v145
    %228 = vmatpush.msra.mxu0 %v143
    %229 = vmatpush.msra.mxu0 %v141
    %230 = vmatpush.msra.mxu0 %v139
    %231 = vmatpush.msra.mxu0 %v137
    %232 = vmatpush.msra.mxu0 %v135
    %233 = vmatpush.msra.mxu0 %v133
    %234 = vmatpush.msra.mxu0 %v131
    %235 = vmatpush.msra.mxu0 %v129
    %236 = vmatpush.msra.mxu0 %v127
    %237 = vmatpush.msra.mxu0 %v125
    %238 = vmatpush.msra.mxu0 %v123
    %239 = vmatpush.msra.mxu0 %v121
    %240 = vmatpush.msra.mxu0 %v119
    %241 = vmatmul.f32.gmra.mxu0 %v83
    %v242 = vpop.f32.mrf.mxu0
    %v243 = vadd.f32 %v220, %v242
    %244 = vmatmul.f32.gmra.mxu0 %v85
    %v245 = vpop.f32.mrf.mxu0
    %v246 = vadd.f32 %v223, %v245
    %247 = vdwg.mxu0
    %v248 = vmax.f32 %v197, 0.0
    %v249 = vmax.f32 %v243, 0.0
    %v250 = vmax.f32 %v200, 0.0
    %v251 = vmax.f32 %v246, 0.0
    %v252 = vld [vmem:[#allocation8] sm:$0xff]
    %v253 = vld [vmem:[#allocation8 + $0x8] sm:$0xff]
    %v254 = vld [vmem:[#allocation8 + $0x10] sm:$0xff]
    %v255 = vld [vmem:[#allocation8 + $0x18] sm:$0xff]
    %v256 = vld [vmem:[#allocation8 + $0x20] sm:$0xff]
    %v257 = vld [vmem:[#allocation8 + $0x28] sm:$0xff]
    %v258 = vld [vmem:[#allocation8 + $0x30] sm:$0xff]
    %v259 = vld [vmem:[#allocation8 + $0x38] sm:$0xff]
    %v260 = vld [vmem:[#allocation8 + $0x40] sm:$0xff]
    %v261 = vld [vmem:[#allocation8 + $0x48] sm:$0xff]
    %v262 = vld [vmem:[#allocation8 + $0x50] sm:$0xff]
    %v263 = vld [vmem:[#allocation8 + $0x58] sm:$0xff]
    %v264 = vld [vmem:[#allocation8 + $0x60] sm:$0xff]
    %v265 = vld [vmem:[#allocation8 + $0x68] sm:$0xff]
    %v266 = vld [vmem:[#allocation8 + $0x70] sm:$0xff]
    %v267 = vld [vmem:[#allocation8 + $0x78] sm:$0xff]
    %v268 = vld [vmem:[#allocation8 + $0x80] sm:$0xff]
    %v269 = vld [vmem:[#allocation8 + $0x88] sm:$0xff]
    %v270 = vld [vmem:[#allocation8 + $0x90] sm:$0xff]
    %v271 = vld [vmem:[#allocation8 + $0x98] sm:$0xff]
    %v272 = vld [vmem:[#allocation8 + $0xa0] sm:$0xff]
    %v273 = vld [vmem:[#allocation8 + $0xa8] sm:$0xff]
    %v274 = vld [vmem:[#allocation8 + $0xb0] sm:$0xff]
    %v275 = vld [vmem:[#allocation8 + $0xb8] sm:$0xff]
    %v276 = vld [vmem:[#allocation8 + $0xc0] sm:$0xff]
    %v277 = vld [vmem:[#allocation8 + $0xc8] sm:$0xff]
    %v278 = vld [vmem:[#allocation8 + $0xd0] sm:$0xff]
    %v279 = vld [vmem:[#allocation8 + $0xd8] sm:$0xff]
    %v280 = vld [vmem:[#allocation8 + $0xe0] sm:$0xff]
    %v281 = vld [vmem:[#allocation8 + $0xe8] sm:$0xff]
    %v282 = vld [vmem:[#allocation8 + $0xf0] sm:$0xff]
    %v283 = vld [vmem:[#allocation8 + $0xf8] sm:$0xff]
    %v284 = vld [vmem:[#allocation8 + $0x100] sm:$0xff]
    %v285 = vld [vmem:[#allocation8 + $0x108] sm:$0xff]
    %v286 = vld [vmem:[#allocation8 + $0x110] sm:$0xff]
    %v287 = vld [vmem:[#allocation8 + $0x118] sm:$0xff]
    %v288 = vld [vmem:[#allocation8 + $0x120] sm:$0xff]
    %v289 = vld [vmem:[#allocation8 + $0x128] sm:$0xff]
    %v290 = vld [vmem:[#allocation8 + $0x130] sm:$0xff]
    %v291 = vld [vmem:[#allocation8 + $0x138] sm:$0xff]
    %v292 = vld [vmem:[#allocation8 + $0x140] sm:$0xff]
    %v293 = vld [vmem:[#allocation8 + $0x148] sm:$0xff]
    %v294 = vld [vmem:[#allocation8 + $0x150] sm:$0xff]
    %v295 = vld [vmem:[#allocation8 + $0x158] sm:$0xff]
    %v296 = vld [vmem:[#allocation8 + $0x160] sm:$0xff]
    %v297 = vld [vmem:[#allocation8 + $0x168] sm:$0xff]
    %v298 = vld [vmem:[#allocation8 + $0x170] sm:$0xff]
    %v299 = vld [vmem:[#allocation8 + $0x178] sm:$0xff]
    %v300 = vld [vmem:[#allocation8 + $0x180] sm:$0xff]
    %v301 = vld [vmem:[#allocation8 + $0x188] sm:$0xff]
    %v302 = vld [vmem:[#allocation8 + $0x190] sm:$0xff]
    %v303 = vld [vmem:[#allocation8 + $0x198] sm:$0xff]
    %v304 = vld [vmem:[#allocation8 + $0x1a0] sm:$0xff]
    %v305 = vld [vmem:[#allocation8 + $0x1a8] sm:$0xff]
    %v306 = vld [vmem:[#allocation8 + $0x1b0] sm:$0xff]
    %v307 = vld [vmem:[#allocation8 + $0x1b8] sm:$0xff]
    %v308 = vld [vmem:[#allocation8 + $0x1c0] sm:$0xff]
    %v309 = vld [vmem:[#allocation8 + $0x1c8] sm:$0xff]
    %v310 = vld [vmem:[#allocation8 + $0x1d0] sm:$0xff]
    %v311 = vld [vmem:[#allocation8 + $0x1d8] sm:$0xff]
    %v312 = vld [vmem:[#allocation8 + $0x1e0] sm:$0xff]
    %v313 = vld [vmem:[#allocation8 + $0x1e8] sm:$0xff]
    %v314 = vld [vmem:[#allocation8 + $0x1f0] sm:$0xff]
    %v315 = vld [vmem:[#allocation8 + $0x1f8] sm:$0xff]
    %v316 = vld [vmem:[%s4] sm:$0x3]
    %v318 = vperm.slane %v316, 0
    %v319 = vperm.slane %v316, 1
    %322 = vmatpush.msra.mxu0 %v282
    %323 = vmatpush.msra.mxu0 %v280
    %324 = vmatpush.msra.mxu0 %v278
    %325 = vmatpush.msra.mxu0 %v276
    %326 = vmatpush.msra.mxu0 %v274
    %327 = vmatpush.msra.mxu0 %v272
    %328 = vmatpush.msra.mxu0 %v270
    %329 = vmatpush.msra.mxu0 %v268
    %330 = vmatpush.msra.mxu0 %v266
    %331 = vmatpush.msra.mxu0 %v264
    %332 = vmatpush.msra.mxu0 %v262
    %333 = vmatpush.msra.mxu0 %v260
    %334 = vmatpush.msra.mxu0 %v258
    %335 = vmatpush.msra.mxu0 %v256
    %336 = vmatpush.msra.mxu0 %v254
    %337 = vmatpush.msra.mxu0 %v252
    %338 = vmatmul.f32.gmra.mxu0 %v248
    %v339 = vpop.f32.mrf.mxu0
    %v340 = vadd.f32 %v318, %v339
    %341 = vmatmul.f32.gmra.mxu0 %v250
    %v342 = vpop.f32.mrf.mxu0
    %v343 = vadd.f32 %v318, %v342
    %344 = vdwg.mxu0
    %345 = vmatpush.msra.mxu0 %v314
    %346 = vmatpush.msra.mxu0 %v312
    %347 = vmatpush.msra.mxu0 %v310
    %348 = vmatpush.msra.mxu0 %v308
    %349 = vmatpush.msra.mxu0 %v306
    %350 = vmatpush.msra.mxu0 %v304
    %351 = vmatpush.msra.mxu0 %v302
    %352 = vmatpush.msra.mxu0 %v300
    %353 = vmatpush.msra.mxu0 %v298
    %354 = vmatpush.msra.mxu0 %v296
    %355 = vmatpush.msra.mxu0 %v294
    %356 = vmatpush.msra.mxu0 %v292
    %357 = vmatpush.msra.mxu0 %v290
    %358 = vmatpush.msra.mxu0 %v288
    %359 = vmatpush.msra.mxu0 %v286
    %360 = vmatpush.msra.mxu0 %v284
    %361 = vmatmul.f32.gmra.mxu0 %v249
    %v362 = vpop.f32.mrf.mxu0
    %v363 = vadd.f32 %v340, %v362
    %364 = vmatmul.f32.gmra.mxu0 %v251
    %v365 = vpop.f32.mrf.mxu0
    %v366 = vadd.f32 %v343, %v365
    %367 = vdwg.mxu0
    %368 = vmatpush.msra.mxu0 %v283
    %369 = vmatpush.msra.mxu0 %v281
    %370 = vmatpush.msra.mxu0 %v279
    %371 = vmatpush.msra.mxu0 %v277
    %372 = vmatpush.msra.mxu0 %v275
    %373 = vmatpush.msra.mxu0 %v273
    %374 = vmatpush.msra.mxu0 %v271
    %375 = vmatpush.msra.mxu0 %v269
    %376 = vmatpush.msra.mxu0 %v267
    %377 = vmatpush.msra.mxu0 %v265
    %378 = vmatpush.msra.mxu0 %v263
    %379 = vmatpush.msra.mxu0 %v261
    %380 = vmatpush.msra.mxu0 %v259
    %381 = vmatpush.msra.mxu0 %v257
    %382 = vmatpush.msra.mxu0 %v255
    %383 = vmatpush.msra.mxu0 %v253
    %384 = vmatmul.f32.gmra.mxu0 %v248
    %v385 = vpop.f32.mrf.mxu0
    %v386 = vadd.f32 %v319, %v385
    %387 = vmatmul.f32.gmra.mxu0 %v250
    %v388 = vpop.f32.mrf.mxu0
    %v389 = vadd.f32 %v319, %v388
    %390 = vdwg.mxu0
    %391 = vmatpush.msra.mxu0 %v315
    %392 = vmatpush.msra.mxu0 %v313
    %393 = vmatpush.msra.mxu0 %v311
    %394 = vmatpush.msra.mxu0 %v309
    %395 = vmatpush.msra.mxu0 %v307
    %396 = vmatpush.msra.mxu0 %v305
    %397 = vmatpush.msra.mxu0 %v303
    %398 = vmatpush.msra.mxu0 %v301
    %399 = vmatpush.msra.mxu0 %v299
    %400 = vmatpush.msra.mxu0 %v297
    %401 = vmatpush.msra.mxu0 %v295
    %402 = vmatpush.msra.mxu0 %v293
    %403 = vmatpush.msra.mxu0 %v291
    %404 = vmatpush.msra.mxu0 %v289
    %405 = vmatpush.msra.mxu0 %v287
    %406 = vmatpush.msra.mxu0 %v285
    %407 = vmatmul.f32.gmra.mxu0 %v249
    %v408 = vpop.f32.mrf.mxu0
    %v409 = vadd.f32 %v386, %v408
    %410 = vmatmul.f32.gmra.mxu0 %v251
    %v411 = vpop.f32.mrf.mxu0
    %v412 = vadd.f32 %v389, %v411
    %413 = vdwg.mxu0
    %414 = vst [vmem:[#allocation10] sm:$0xff] %v363
    %415 = vst [vmem:[#allocation10 + $0x8] sm:$0xff] %v409
    %416 = vst [vmem:[#allocation10 + $0x10] sm:$0xff] %v366
    %417 = vst [vmem:[#allocation10 + $0x18] sm:$0xff] %v412
    // Predicated region
    $region38: #{tpu_custom_call.1} parent=1 // pred_check
      _
    $region39: #{tpu_custom_call.1} parent=1 // pred_check_branch
      %419 = sbr.rel (0) target = $region41
    $region40: #{tpu_custom_call.1} parent=1 // pred_region
      %421 = vsyncadd [#allocation4], 0
      %s422 = sshll.u32 [#allocation10], 4
      %s423 = int_to_ptr.vmem [resolvable:$true] %s422
      %s424 = sshll.u32 %s5, 4
      %s425 = int_to_ptr.hbm [resolvable:$true] %s424
      %430 = dma.vmem_to_hbm [thread:$0]  %s423, 512, %s425, [#allocation4], 256, 256, 16
    $region41: #{tpu_custom_call.1} parent=1 // pred_fallthru
      _
    // Predicated region
    $region42: #{tpu_custom_call.1} parent=1 // pred_check
      _
    $region43: #{tpu_custom_call.1} parent=1 // pred_check_branch
      %432 = sbr.rel (0) target = $region45
    $region44: #{tpu_custom_call.1} parent=1 // pred_region
      %434 = dma.done [#allocation4], 512
    $region45: #{tpu_custom_call.1} parent=1 // pred_fallthru
      _
    %435 = vsyncpa [#allocation3], 1
    %436 = vsyncpa [#allocation6], 1
    %437 = vsyncpa [#allocation9], 1
    %438 = vsyncpa [#allocation4], 1

</llo_original>
